<compile_context>
chip_gen: v5e
topology: v5e:2x2
jax: 0.10.0
libtpu: 0.0.40
codegen_flags: <defaults>
</compile_context>

<pallas_src>
import functools

import jax
import jax.numpy as jnp
from jax import lax
from jax.experimental import pallas as pl
from jax.experimental.pallas import tpu as pltpu

K = 4  # ConvTranspose2d kernel size
S = 2  # stride
P = 1  # padding


def _round_up(x, m):
    return (x + m - 1) // m * m


def _vmem_budget():
    """Generation-aware (v5e/v6e: 128 MiB, v7x: 64 MiB) VMEM budgeting."""
    try:
        cap = int(pltpu.get_tpu_info().vmem_capacity_bytes)
    except Exception:
        cap = 64 * 1024 * 1024                       # conservative fallback
    budget = cap // 3                                # double-buffered working set
    limit = int(min(cap * 3 // 4, 96 * 1024 * 1024)) # scoped-VMEM limit for Mosaic
    return budget, limit


def _pick_block_rows(n, h, w, cin, cout, vmem_budget):
    """Input rows per grid step: largest divisor of h whose double-buffered
    footprint fits the budget; keep >=2 total grid steps when possible."""
    stride = w + 2
    kc = 9 * cin + 1

    def step_bytes(th):
        flat_blk = _round_up(th * stride, 128)
        flat_in = 2 * stride + 2 + flat_blk
        in_b = _round_up(cin, 8) * _round_up(flat_in, 128) * 4
        out_b = _round_up(4 * cout, 8) * flat_blk * 4
        wf_b = _round_up(4 * cout, 8) * _round_up(kc, 128) * 4
        col_b = _round_up(kc, 8) * flat_blk * 4
        return 2 * (in_b + out_b + wf_b) + 2 * col_b

    divs = [d for d in range(h, 0, -1) if h % d == 0]
    th = next((d for d in divs if step_bytes(d) <= vmem_budget), 1)
    while n * (h // th) < 2:                 # give both TCs work on v7x
        smaller = [d for d in divs if d < th]
        if not smaller:
            break
        th = smaller[0]
    return th


def _decoder_block_kernel(x_ref, wf_ref, o_ref, *, stride, flat_blk):
    # x_ref : (1, 1, Cin, FLAT_IN)   ReLU'd, zero-padded, row-windowed input,
    #                                flattened over (rows, padded width)
    # wf_ref: (4*Cout, 9*Cin + 1)    fused per-phase weights + bias column
    # o_ref : (1, 1, 4*Cout, FLAT)   phase-major, lane-dense output slab
    #
    # Build the shared 3x3-tap im2col (+ ones row for the bias) as a register
    # value and do ONE MXU matmul for all 4 phases.
    taps = [x_ref[0, 0, :, pl.ds(a * stride + b, flat_blk)]
            for a in range(3) for b in range(3)]
    taps.append(jnp.ones((1, flat_blk), dtype=x_ref.dtype))
    cols = jnp.concatenate(taps, axis=0)                  # (9*Cin+1, FLAT)
    y = jnp.dot(wf_ref[...], cols, preferred_element_type=jnp.float32)
    o_ref[0, 0, :, :] = y.astype(o_ref.dtype)


def _build_fused_weight(w_pt, b_pt, cin, cout, dtype):
    """(4*Cout, 9*Cin+1): rows m = (2*ph+pw)*Cout + co, columns = 3x3 unique
    taps (zero where a phase does not use a tap) + bias column."""
    blocks = []
    for ph in (0, 1):
        for pw in (0, 1):
            taps = []
            for a in range(3):
                for b in range(3):
                    dh, dw = a - ph, b - pw
                    if dh in (0, 1) and dw in (0, 1):
                        taps.append(w_pt[:, :, 3 - ph - 2 * dh, 3 - pw - 2 * dw].T)
                    else:
                        taps.append(jnp.zeros((cout, cin), w_pt.dtype))
            taps.append(b_pt.reshape(cout, 1).astype(w_pt.dtype))
            blocks.append(jnp.concatenate(taps, axis=1))  # (Cout, 9*Cin+1)
    return jnp.concatenate(blocks, axis=0).astype(dtype)  # (4*Cout, 9*Cin+1)


def decoder_block_forward(x_nchw, w_pt, b_pt, *, block_rows=None,
                          compute_dtype=jnp.float32):
    """Forward of DecoderBlock(in_c, out_c) with default flags.

    x_nchw : (N, Cin, H, W) float32   (PyTorch NCHW convention)
    w_pt   : (Cin, Cout, K, K)        (PyTorch ConvTranspose2d weight layout)
    b_pt   : (Cout,)
    returns: (N, Cout, 2H, 2W) float32
    """
    n, cin, h, w = x_nchw.shape
    cout = w_pt.shape[1]
    budget, vmem_limit = _vmem_budget()
    th = (_pick_block_rows(n, h, w, cin, cout, budget)
          if block_rows is None else block_rows)
    assert h % th == 0
    t_tiles = h // th
    stride = w + 2                             # padded-row width == flat stride
    flat_blk = _round_up(th * stride, 128)     # lane-dense matmul N / store dim
    flat_in = 2 * stride + 2 + flat_blk        # covers max tap offset + flat_blk
    win = (th + 2) * stride                    # real data per (th+2)-row window
    kc = 9 * cin + 1

    # --- wrapper glue (plain JAX, fused by XLA) -----------------------------
    # ReLU + zero-pad once on the un-dilated input (pad zeros are ReLU-invariant).
    xp = jnp.pad(jnp.maximum(x_nchw, 0.0), ((0, 0), (0, 0), (1, 1), (1, 1)))
    if t_tiles == 1:
        xw = xp.reshape(n, 1, cin, win)        # no halo duplication at all
    else:
        xw = jnp.stack(
            [xp[:, :, i * th:i * th + th + 2, :] for i in range(t_tiles)], axis=1)
        xw = xw.reshape(n, t_tiles, cin, win)
    xw = jnp.pad(xw, ((0, 0), (0, 0), (0, 0), (0, flat_in - win)))
    xw = xw.astype(compute_dtype)

    wf = _build_fused_weight(w_pt, b_pt, cin, cout, compute_dtype)

    kernel = functools.partial(_decoder_block_kernel,
                               stride=stride, flat_blk=flat_blk)

    out = pl.pallas_call(
        kernel,
        out_shape=jax.ShapeDtypeStruct((n, t_tiles, 4 * cout, flat_blk),
                                       jnp.float32),
        grid_spec=pltpu.PrefetchScalarGridSpec(
            num_scalar_prefetch=0,
            grid=(n, t_tiles),
            in_specs=[
                pl.BlockSpec((1, 1, cin, flat_in), lambda i, t: (i, t, 0, 0)),
                pl.BlockSpec((4 * cout, kc), lambda i, t: (0, 0)),
            ],
            out_specs=pl.BlockSpec((1, 1, 4 * cout, flat_blk),
                                   lambda i, t: (i, t, 0, 0)),
        ),
        compiler_params=pltpu.CompilerParams(
            dimension_semantics=("parallel", "parallel"),
            vmem_limit_bytes=vmem_limit,
        ),
    )(xw, wf)

    # --- phase interleave + NCHW reassembly (single wrapper-side transpose) --
    out = out[..., : th * stride]
    out = out.reshape(n, t_tiles, 2, 2, cout, th, stride)[..., :w]
    out = jnp.transpose(out, (0, 4, 1, 5, 2, 6, 3))   # (N, Cout, T, th, 2, W, 2)
    return out.reshape(n, cout, 2 * h, 2 * w)


def _reference(x_nchw, w_pt, b_pt):
    """Pure-JAX reference: ReLU -> ConvTranspose2d(k=4, s=2, p=1)."""
    xr = jnp.maximum(x_nchw, 0.0)
    r = jnp.transpose(jnp.flip(w_pt, axis=(2, 3)), (1, 0, 2, 3))  # (Cout,Cin,K,K)
    y = lax.conv_general_dilated(
        xr, r, window_strides=(1, 1),
        padding=[(K - 1 - P, K - 1 - P)] * 2,
        lhs_dilation=(S, S),
        dimension_numbers=('NCHW', 'OIHW', 'NCHW'))
    return y + b_pt[None, :, None, None]


if __name__ == "__main__":
    # small shapes: batch=2, in_channels=4, out_channels=8, spatial=16
    key = jax.random.PRNGKey(0)
    kx, kw, kb = jax.random.split(key, 3)

    N, CIN, COUT, H, W = 2, 4, 8, 16, 16
    x = jax.random.normal(kx, (N, CIN, H, W), dtype=jnp.float32)
    w_pt = 0.1 * jax.random.normal(kw, (CIN, COUT, K, K), dtype=jnp.float32)
    b_pt = 0.1 * jax.random.normal(kb, (COUT,), dtype=jnp.float32)

    fwd = jax.jit(decoder_block_forward)
    out = jax.block_until_ready(fwd(x, w_pt, b_pt))

    ref = _reference(x, w_pt, b_pt)
    assert out.shape == (N, COUT, 2 * H, 2 * W), out.shape
    assert jnp.allclose(out, ref, atol=1e-3, rtol=1e-3), "mismatch vs reference"

    # TODO(synk): use_bn / use_dropout / use_upsample branches of DecoderBlock
    # are off in the default config and are not implemented here.
    print("KERNEL_OK")
</pallas_src>

<mosaic_0001>
module attributes {stable_mosaic.version = 11 : i64} {
  func.func @_decoder_block_kernel(%arg0: i32, %arg1: i32, %arg2: memref<1x1x4x422xf32, #tpu.memory_space<vmem>>, %arg3: memref<32x37xf32, #tpu.memory_space<vmem>>, %arg4: memref<1x1x32x384xf32, #tpu.memory_space<vmem>>) attributes {dimension_semantics = [#tpu.dimension_semantics<parallel>, #tpu.dimension_semantics<parallel>], iteration_bounds = array<i64: 2, 1>, scalar_prefetch = 0 : i64, scratch_operands = 0 : i64, tpu.core_type = #tpu.core_type<tc>, window_params = [{transform_indices = @transform_0, window_bounds = array<i64: 1, 1, 4, 422>}, {pipeline_mode = #tpu.pipeline_mode<synchronous>, transform_indices = @transform_1, window_bounds = array<i64: 32, 37>}, {transform_indices = @transform_2, window_bounds = array<i64: 1, 1, 32, 384>}]} {
    %c0 = arith.constant 0 : index
    %c0_0 = arith.constant 0 : index
    %c0_1 = arith.constant 0 : index
    %c0_2 = arith.constant 0 : index
    %0 = vector.load %arg2[%c0, %c0_0, %c0_1, %c0_2] : memref<1x1x4x422xf32, #tpu.memory_space<vmem>>, vector<1x1x4x384xf32>
    %1 = vector.shape_cast %0 : vector<1x1x4x384xf32> to vector<4x384xf32>
    %c0_3 = arith.constant 0 : index
    %c0_4 = arith.constant 0 : index
    %c0_5 = arith.constant 0 : index
    %c1 = arith.constant 1 : index
    %2 = vector.load %arg2[%c0_3, %c0_4, %c0_5, %c1] : memref<1x1x4x422xf32, #tpu.memory_space<vmem>>, vector<1x1x4x384xf32>
    %3 = vector.shape_cast %2 : vector<1x1x4x384xf32> to vector<4x384xf32>
    %c0_6 = arith.constant 0 : index
    %c0_7 = arith.constant 0 : index
    %c0_8 = arith.constant 0 : index
    %c2 = arith.constant 2 : index
    %4 = vector.load %arg2[%c0_6, %c0_7, %c0_8, %c2] : memref<1x1x4x422xf32, #tpu.memory_space<vmem>>, vector<1x1x4x384xf32>
    %5 = vector.shape_cast %4 : vector<1x1x4x384xf32> to vector<4x384xf32>
    %c0_9 = arith.constant 0 : index
    %c0_10 = arith.constant 0 : index
    %c0_11 = arith.constant 0 : index
    %c18 = arith.constant 18 : index
    %6 = vector.load %arg2[%c0_9, %c0_10, %c0_11, %c18] : memref<1x1x4x422xf32, #tpu.memory_space<vmem>>, vector<1x1x4x384xf32>
    %7 = vector.shape_cast %6 : vector<1x1x4x384xf32> to vector<4x384xf32>
    %c0_12 = arith.constant 0 : index
    %c0_13 = arith.constant 0 : index
    %c0_14 = arith.constant 0 : index
    %c19 = arith.constant 19 : index
    %8 = vector.load %arg2[%c0_12, %c0_13, %c0_14, %c19] : memref<1x1x4x422xf32, #tpu.memory_space<vmem>>, vector<1x1x4x384xf32>
    %9 = vector.shape_cast %8 : vector<1x1x4x384xf32> to vector<4x384xf32>
    %c0_15 = arith.constant 0 : index
    %c0_16 = arith.constant 0 : index
    %c0_17 = arith.constant 0 : index
    %c20 = arith.constant 20 : index
    %10 = vector.load %arg2[%c0_15, %c0_16, %c0_17, %c20] : memref<1x1x4x422xf32, #tpu.memory_space<vmem>>, vector<1x1x4x384xf32>
    %11 = vector.shape_cast %10 : vector<1x1x4x384xf32> to vector<4x384xf32>
    %c0_18 = arith.constant 0 : index
    %c0_19 = arith.constant 0 : index
    %c0_20 = arith.constant 0 : index
    %c36 = arith.constant 36 : index
    %12 = vector.load %arg2[%c0_18, %c0_19, %c0_20, %c36] : memref<1x1x4x422xf32, #tpu.memory_space<vmem>>, vector<1x1x4x384xf32>
    %13 = vector.shape_cast %12 : vector<1x1x4x384xf32> to vector<4x384xf32>
    %c0_21 = arith.constant 0 : index
    %c0_22 = arith.constant 0 : index
    %c0_23 = arith.constant 0 : index
    %c37 = arith.constant 37 : index
    %14 = vector.load %arg2[%c0_21, %c0_22, %c0_23, %c37] : memref<1x1x4x422xf32, #tpu.memory_space<vmem>>, vector<1x1x4x384xf32>
    %15 = vector.shape_cast %14 : vector<1x1x4x384xf32> to vector<4x384xf32>
    %c0_24 = arith.constant 0 : index
    %c0_25 = arith.constant 0 : index
    %c0_26 = arith.constant 0 : index
    %c38 = arith.constant 38 : index
    %16 = vector.load %arg2[%c0_24, %c0_25, %c0_26, %c38] : memref<1x1x4x422xf32, #tpu.memory_space<vmem>>, vector<1x1x4x384xf32>
    %17 = vector.shape_cast %16 : vector<1x1x4x384xf32> to vector<4x384xf32>
    %cst = arith.constant 1.000000e+00 : f32
    %18 = vector.broadcast %cst : f32 to vector<1x384xf32>
    %19 = tpu.concatenate %1, %3, %5, %7, %9, %11, %13, %15, %17, %18 in 0 : vector<4x384xf32>, vector<4x384xf32>, vector<4x384xf32>, vector<4x384xf32>, vector<4x384xf32>, vector<4x384xf32>, vector<4x384xf32>, vector<4x384xf32>, vector<4x384xf32>, vector<1x384xf32> -> vector<37x384xf32>
    %c0_27 = arith.constant 0 : index
    %c0_28 = arith.constant 0 : index
    %20 = vector.load %arg3[%c0_27, %c0_28] : memref<32x37xf32, #tpu.memory_space<vmem>>, vector<32x37xf32>
    %cst_29 = arith.constant dense<0.000000e+00> : vector<32x384xf32>
    %21 = tpu.matmul %20, %19, %cst_29 {dimension_numbers = #tpu.dot_dimension_numbers<[1], [0], [0], [1], [0, 0, 1, 1], [], []>} : vector<32x37xf32>, vector<37x384xf32>, vector<32x384xf32> -> vector<32x384xf32>
    %c0_30 = arith.constant 0 : index
    %c0_31 = arith.constant 0 : index
    %c0_32 = arith.constant 0 : index
    %c0_33 = arith.constant 0 : index
    %22 = vector.load %arg4[%c0_30, %c0_31, %c0_32, %c0_33] : memref<1x1x32x384xf32, #tpu.memory_space<vmem>>, vector<1x1x32x384xf32>
    %23 = vector.shape_cast %22 : vector<1x1x32x384xf32> to vector<32x384xf32>
    %24 = vector.shape_cast %21 : vector<32x384xf32> to vector<1x1x32x384xf32>
    tpu.vector_store %arg4[%c0_30, %c0_31, %c0_32, %c0_33], %24 {strides = array<i32>} : memref<1x1x32x384xf32, #tpu.memory_space<vmem>>, vector<1x1x32x384xf32>,
    return
  }
  func.func @transform_0(%arg0: i32, %arg1: i32) -> (i32, i32, i32, i32) {
    %c0_i32 = arith.constant 0 : i32
    %c0_i32_0 = arith.constant 0 : i32
    %c0_i32_1 = arith.constant 0 : i32
    return %arg0, %arg1, %c0_i32, %c0_i32_0 : i32, i32, i32, i32
  }
  func.func @transform_1(%arg0: i32, %arg1: i32) -> (i32, i32) {
    %c0_i32 = arith.constant 0 : i32
    %c0_i32_0 = arith.constant 0 : i32
    %c0_i32_1 = arith.constant 0 : i32
    return %c0_i32, %c0_i32_0 : i32, i32
  }
  func.func @transform_2(%arg0: i32, %arg1: i32) -> (i32, i32, i32, i32) {
    %c0_i32 = arith.constant 0 : i32
    %c0_i32_0 = arith.constant 0 : i32
    %c0_i32_1 = arith.constant 0 : i32
    return %arg0, %arg1, %c0_i32, %c0_i32_0 : i32, i32, i32, i32
  }
}

</mosaic_0001>

<llo_original>
// kernel: decoder_block_forward.1
$region0: #{decoder_block_forward.1}
  #allocation0 [shape = 'u32[]', space=smem, size = 0x4, offset = 0x4, fixed_abs, tag = 'smem constant byte address 0x4 - core index']
  #allocation1 [shape = 'u32[72,128]{1,0:T(1,128)}', space=vmem, size = 0x9000, scoped, tag = 'internal scratch']
  %s0 = inlined_call_operand.vmem [shape: f32[2,1,4,422], index: 0, kind: input, shape index: {}]
  %s1 = inlined_call_operand.vmem [shape: f32[32,37], index: 1, kind: input, shape index: {}]
  %s2 = inlined_call_operand.vmem [shape: f32[2,1,32,384], index: 2, kind: output, shape index: {}]
  %s3 = sld [smem:[#allocation0]]
  $region41: #{decoder_block_forward.1} parent=0
    _
  %s5 = ssub.s32 1, %s3
  %s6 = scalar_select 0, %s5, %s3
  loop: start=0, step=1, limit=4
  $region2: #{decoder_block_forward.1} parent=0 // loop_pre_header
    _
  $region3: #{decoder_block_forward.1} parent=0 // loop_header
    %s8 = sphi 0, %s12
    %p9 = scmp.ge.s32.totalorder %s8, 4
    %s15 = sphi 0, %s27
    %s16 = sphi 0, %s23
    %s17 = sphi 0, %s15
    %s18 = sphi 0, %s16
    %s19 = sphi 0, %s17
    %s20 = sphi 0, %s18
    %s32 = sphi 0, %s34
    %s35 = sphi 0, %s32
    %s36 = sphi 0, %s35
    %s52 = sphi 0, %s36
    %s56 = sphi 0, %s56
    %s58 = sphi 0, %s56
    %s59 = sphi 0, %s58
    %s73 = sphi 0, %s59
    %s81 = sphi 0, %s83
    %s84 = sphi 0, %s81
    %s85 = sphi 0, %s84
    %s101 = sphi 0, %s85
  $region4: #{decoder_block_forward.1} parent=0 // loop_header_branch
    %11 = sbr.rel (%p9) target = $region8
  $region5: #{decoder_block_forward.1} parent=0 // loop_body
    %s13 = ssub.s32 %s8, 1
    %s14 = ssub.s32 %s8, 2
    %s21 = sadd.s32 1, %s16
    %p22 = scmp.ge.s32.totalorder %s21, 1
    %s23 = scalar_select %p22, 0, %s21
    %s24 = sadd.s32 1, %s15
    %s25 = scalar_select %p22, %s24, %s15
    %p26 = scmp.ge.s32.totalorder %s25, 2
    %s27 = scalar_select %p26, 0, %s25
    %s28 = ssub.s32 %s15, %s27
    %s29 = ssub.s32 %s16, %s23
    %s30 = sor.u32 %s28, %s29
    %p31 = scmp.eq.s32.totalorder %s30, 0
    %s33 = sadd.s32 %s32, 1
    %s34 = scalar_select %p31, %s32, %s33
    %p37 = pneg %p31
    %p38 = scmp.eq.s32.totalorder %s8, 1
    %p39 = por %p37, %p38
    %p40 = scmp.ne.s32.totalorder %s32, %s35
    %p41 = scmp.eq.s32.totalorder %s8, 0
    %p42 = por %p40, %p41
    %p43 = scmp.ne.s32.totalorder %s32, %s35
    %p44 = scmp.eq.s32.totalorder %s13, 1
    %p45 = por %p43, %p44
    %p46 = scmp.ne.s32.totalorder %s35, %s36
    %p47 = scmp.eq.s32.totalorder %s13, 0
    %p48 = por %p46, %p47
    %p49 = scmp.ne.s32.totalorder %s35, %s36
    %p50 = scmp.eq.s32.totalorder %s14, 1
    %p51 = por %p49, %p50
    %p53 = scmp.ne.s32.totalorder %s36, %s52
    %p54 = scmp.eq.s32.totalorder %s14, 0
    %p55 = por %p53, %p54
    %s57 = sadd.s32 %s56, 1
    %p60 = scmp.eq.s32.totalorder %s8, 1
    %p61 = scmp.ne.s32.totalorder %s56, %s58
    %p62 = scmp.eq.s32.totalorder %s8, 0
    %p63 = por %p61, %p62
    %p64 = scmp.ne.s32.totalorder %s56, %s58
    %p65 = scmp.eq.s32.totalorder %s13, 1
    %p66 = por %p64, %p65
    %p67 = scmp.ne.s32.totalorder %s58, %s59
    %p68 = scmp.eq.s32.totalorder %s13, 0
    %p69 = por %p67, %p68
    %p70 = scmp.ne.s32.totalorder %s58, %s59
    %p71 = scmp.eq.s32.totalorder %s14, 1
    %p72 = por %p70, %p71
    %p74 = scmp.ne.s32.totalorder %s59, %s73
    %p75 = scmp.eq.s32.totalorder %s14, 0
    %p76 = por %p74, %p75
    %s77 = ssub.s32 %s15, %s27
    %s78 = ssub.s32 %s16, %s23
    %s79 = sor.u32 %s77, %s78
    %p80 = scmp.eq.s32.totalorder %s79, 0
    %s82 = sadd.s32 %s81, 1
    %s83 = scalar_select %p80, %s81, %s82
    %p86 = pneg %p80
    %p87 = scmp.eq.s32.totalorder %s8, 1
    %p88 = por %p86, %p87
    %p89 = scmp.ne.s32.totalorder %s81, %s84
    %p90 = scmp.eq.s32.totalorder %s8, 0
    %p91 = por %p89, %p90
    %p92 = scmp.ne.s32.totalorder %s81, %s84
    %p93 = scmp.eq.s32.totalorder %s13, 1
    %p94 = por %p92, %p93
    %p95 = scmp.ne.s32.totalorder %s84, %s85
    %p96 = scmp.eq.s32.totalorder %s13, 0
    %p97 = por %p95, %p96
    %p98 = scmp.ne.s32.totalorder %s84, %s85
    %p99 = scmp.eq.s32.totalorder %s14, 1
    %p100 = por %p98, %p99
    %p102 = scmp.ne.s32.totalorder %s85, %s101
    %p103 = scmp.eq.s32.totalorder %s14, 0
    %p104 = por %p102, %p103
    %p105 = scmp.le.s32.totalorder 1, %s8
    %p106 = scmp.lt.s32.totalorder %s8, 3
    %p107 = pnand %p105, %p106
    %p108 = pneg %p107
    // Predicated region
    $region9: #{decoder_block_forward.1} parent=5 // pred_check
      _
    $region10: #{decoder_block_forward.1} parent=5 // pred_check_branch
      %110 = sbr.rel (%p107) target = $region12
    $region11: #{decoder_block_forward.1} parent=5 // pred_region
      %s111 = ssub.s32 %s8, 1
      // Predicated region
      $region13: #{decoder_block_forward.1} parent=11 // pred_check
        %p112 = pneg %p69
      $region14: #{decoder_block_forward.1} parent=11 // pred_check_branch
        %114 = sbr.rel (%p112) target = $region16
      $region15: #{decoder_block_forward.1} parent=11 // pred_region
        _
      $region16: #{decoder_block_forward.1} parent=11 // pred_fallthru
        _
    $region12: #{decoder_block_forward.1} parent=5 // pred_fallthru
      _
    %p115 = scmp.lt.s32.totalorder %s8, 2
    // Predicated region
    $region17: #{decoder_block_forward.1} parent=5 // pred_check
      %p116 = pneg %p115
    $region18: #{decoder_block_forward.1} parent=5 // pred_check_branch
      %118 = sbr.rel (%p116) target = $region20
    $region19: #{decoder_block_forward.1} parent=5 // pred_region
      // Predicated region
      $region21: #{decoder_block_forward.1} parent=19 // pred_check
        %p119 = pneg %p42
      $region22: #{decoder_block_forward.1} parent=19 // pred_check_branch
        %121 = sbr.rel (%p119) target = $region24
      $region23: #{decoder_block_forward.1} parent=19 // pred_region
        %p122 = scmp.lt.s32.totalorder %s15, 1
        %s123 = scalar_select %p122, %s15, 1
        %p124 = scmp.lt.s32.totalorder %s16, 0
        %s125 = scalar_select %p124, %s16, 0
        %s126 = smul.addr %s125, 4
        %s127 = smul.addr %s123, 4
        %s128 = sadd.s32 %s126, %s127
        %s129 = smul.addr %s128, 4
        %s130 = scalar_lea.vmem %s0, %s129
      $region24: #{decoder_block_forward.1} parent=19 // pred_fallthru
        _
    $region20: #{decoder_block_forward.1} parent=5 // pred_fallthru
      _
    %p131 = scmp.le.s32.totalorder 1, %s8
    %p132 = scmp.lt.s32.totalorder %s8, 3
    %p133 = pnand %p131, %p132
    %p134 = pneg %p133
    // Predicated region
    $region25: #{decoder_block_forward.1} parent=5 // pred_check
      _
    $region26: #{decoder_block_forward.1} parent=5 // pred_check_branch
      %136 = sbr.rel (%p133) target = $region28
    $region27: #{decoder_block_forward.1} parent=5 // pred_region
      %s137 = ssub.s32 %s8, 1
      %p138 = scmp.lt.s32.totalorder %s17, 1
      %s139 = scalar_select %p138, %s17, 1
      %p140 = scmp.lt.s32.totalorder %s18, 0
      %s141 = scalar_select %p140, %s18, 0
      %s142 = smul.addr %s141, 4
      %s143 = smul.addr %s139, 4
      %s144 = sadd.s32 %s142, %s143
      %s145 = smul.addr %s144, 4
      %s146 = scalar_lea.vmem %s0, %s145
      %p147 = pneg %p48
      %p148 = pneg %p45
      %p149 = pneg %p69
      %p150 = pneg %p66
      %p151 = pneg %p97
      %p152 = pneg %p94
      %p153 = scmp.lt.s32.totalorder %s17, 1
      %s154 = scalar_select %p153, %s17, 1
      %p155 = scmp.lt.s32.totalorder %s18, 0
      %s156 = scalar_select %p155, %s18, 0
      %s157 = smul.addr %s156, 12
      %s158 = smul.addr %s154, 12
      %s159 = sadd.s32 %s157, %s158
      %s160 = smul.addr %s159, 8
      %s161 = scalar_lea.vmem %s2, %s160
      %p162 = scmp.lt.s32.totalorder %s17, 1
      %s163 = scalar_select %p162, %s17, 1
      %p164 = scmp.lt.s32.totalorder %s18, 0
      %s165 = scalar_select %p164, %s18, 0
      %s166 = smul.addr %s165, 4
      %s167 = smul.addr %s163, 4
      %s168 = sadd.s32 %s166, %s167
      %s169 = smul.addr %s168, 4
      %s170 = scalar_lea.vmem %s0, %s169
      %p171 = scmp.lt.s32.totalorder %s17, 1
      %s172 = scalar_select %p171, %s17, 1
      %p173 = scmp.lt.s32.totalorder %s18, 0
      %s174 = scalar_select %p173, %s18, 0
      %s175 = smul.addr %s174, 12
      %s176 = smul.addr %s172, 12
      %s177 = sadd.s32 %s175, %s176
      %s178 = smul.addr %s177, 8
      %s179 = scalar_lea.vmem %s2, %s178
      %v180 = vld [vmem:[%s170] sm:$0xff]
      %v181 = vld [vmem:[%s170 + $0x8] sm:$0xf]
      %v182 = vld [vmem:[%s170 + $0x8] sm:$0xff]
      %185 = vst [vmem:[#allocation1] ss:$2 sm:$0xff] %v180
      %s186 = scalar_lea.vmem [#allocation1], 16
      %187 = vst [vmem:[%s186] ss:$2 sm:$0xff] %v181
      %v188 = vld.sshfl [vmem:[#allocation1] sm:$0xff pattern:$0x75316420]
      %v189 = vld.sshfl [vmem:[#allocation1 + $0x8] sm:$0xff pattern:$0x75316420]
      %v190 = vld.sshfl [vmem:[#allocation1 + $0x10] sm:$0xff pattern:$0x75316420]
      %s195 = scalar_lea.vmem [#allocation1], 1
      %196 = vst [vmem:[%s195] ss:$2 sm:$0xff] %v180
      %s197 = scalar_lea.vmem [#allocation1], 17
      %198 = vst [vmem:[%s197] ss:$2 sm:$0xff] %v182
      %v199 = vld.sshfl [vmem:[#allocation1] sm:$0xff pattern:$0x75316420]
      %v200 = vld.sshfl [vmem:[#allocation1 + $0x8] sm:$0xff pattern:$0x75316420]
      %v201 = vld.sshfl [vmem:[#allocation1 + $0x10] sm:$0xff pattern:$0x75316420]
      %v202 = vld.sshfl [vmem:[#allocation1 + $0x18] sm:$0xff pattern:$0x75316420]
      %203 = vrot.lane.b32.xlu0 %v199, 127
      %v204 = vpop.permute.xlu0 %203
      %205 = vrot.lane.b32.xlu0 %v200, 127
      %v206 = vpop.permute.xlu0 %205
      %207 = vrot.lane.b32.xlu0 %v201, 127
      %v208 = vpop.permute.xlu0 %207
      %209 = vrot.lane.b32.xlu0 %v202, 127
      %v210 = vpop.permute.xlu0 %209
      %vm211 = vcmask 1039360
      %v212 = vsel %vm211, %v204, %v206
      %v213 = vsel %vm211, %v206, %v208
      %v214 = vsel %vm211, %v208, %v210
      %218 = vst [vmem:[#allocation1] ss:$2 sm:$0xff] %v180
      %s219 = scalar_lea.vmem [#allocation1], 16
      %220 = vst [vmem:[%s219] ss:$2 sm:$0xff] %v182
      %v221 = vld.sshfl [vmem:[#allocation1] sm:$0xff pattern:$0x75316420]
      %v222 = vld.sshfl [vmem:[#allocation1 + $0x8] sm:$0xff pattern:$0x75316420]
      %v223 = vld.sshfl [vmem:[#allocation1 + $0x10] sm:$0xff pattern:$0x75316420]
      %v224 = vld.sshfl [vmem:[#allocation1 + $0x18] sm:$0xff pattern:$0x75316420]
      %225 = vrot.lane.b32.xlu0 %v221, 126
      %v226 = vpop.permute.xlu0 %225
      %227 = vrot.lane.b32.xlu0 %v222, 126
      %v228 = vpop.permute.xlu0 %227
      %229 = vrot.lane.b32.xlu0 %v223, 126
      %v230 = vpop.permute.xlu0 %229
      %231 = vrot.lane.b32.xlu0 %v224, 126
      %v232 = vpop.permute.xlu0 %231
      %vm233 = vcmask 1031168
      %v234 = vsel %vm233, %v226, %v228
      %v235 = vsel %vm233, %v228, %v230
      %v236 = vsel %vm233, %v230, %v232
      %s240 = scalar_lea.vmem [#allocation1], 1
      %241 = vst [vmem:[%s240] ss:$2 sm:$0xff] %v180
      %s242 = scalar_lea.vmem [#allocation1], 17
      %243 = vst [vmem:[%s242] ss:$2 sm:$0xff] %v182
      %v244 = vld.sshfl [vmem:[#allocation1] sm:$0xff pattern:$0x75316420]
      %v245 = vld.sshfl [vmem:[#allocation1 + $0x8] sm:$0xff pattern:$0x75316420]
      %v246 = vld.sshfl [vmem:[#allocation1 + $0x10] sm:$0xff pattern:$0x75316420]
      %v247 = vld.sshfl [vmem:[#allocation1 + $0x18] sm:$0xff pattern:$0x75316420]
      %248 = vrot.lane.b32.xlu0 %v244, 110
      %v249 = vpop.permute.xlu0 %248
      %250 = vrot.lane.b32.xlu0 %v245, 110
      %v251 = vpop.permute.xlu0 %250
      %252 = vrot.lane.b32.xlu0 %v246, 110
      %v253 = vpop.permute.xlu0 %252
      %254 = vrot.lane.b32.xlu0 %v247, 110
      %v255 = vpop.permute.xlu0 %254
      %vm256 = vcmask 900096
      %v257 = vsel %vm256, %v249, %v251
      %v258 = vsel %vm256, %v251, %v253
      %v259 = vsel %vm256, %v253, %v255
      %263 = vst [vmem:[#allocation1] ss:$2 sm:$0xff] %v180
      %s264 = scalar_lea.vmem [#allocation1], 16
      %265 = vst [vmem:[%s264] ss:$2 sm:$0xff] %v182
      %v266 = vld.sshfl [vmem:[#allocation1] sm:$0xff pattern:$0x75316420]
      %v267 = vld.sshfl [vmem:[#allocation1 + $0x8] sm:$0xff pattern:$0x75316420]
      %v268 = vld.sshfl [vmem:[#allocation1 + $0x10] sm:$0xff pattern:$0x75316420]
      %v269 = vld.sshfl [vmem:[#allocation1 + $0x18] sm:$0xff pattern:$0x75316420]
      %270 = vrot.lane.b32.xlu0 %v266, 109
      %v271 = vpop.permute.xlu0 %270
      %272 = vrot.lane.b32.xlu0 %v267, 109
      %v273 = vpop.permute.xlu0 %272
      %274 = vrot.lane.b32.xlu0 %v268, 109
      %v275 = vpop.permute.xlu0 %274
      %276 = vrot.lane.b32.xlu0 %v269, 109
      %v277 = vpop.permute.xlu0 %276
      %vm278 = vcmask 891904
      %v279 = vsel %vm278, %v271, %v273
      %v280 = vsel %vm278, %v273, %v275
      %v281 = vsel %vm278, %v275, %v277
      %s285 = scalar_lea.vmem [#allocation1], 1
      %286 = vst [vmem:[%s285] ss:$2 sm:$0xff] %v180
      %s287 = scalar_lea.vmem [#allocation1], 17
      %288 = vst [vmem:[%s287] ss:$2 sm:$0xff] %v182
      %v289 = vld.sshfl [vmem:[#allocation1] sm:$0xff pattern:$0x75316420]
      %v290 = vld.sshfl [vmem:[#allocation1 + $0x8] sm:$0xff pattern:$0x75316420]
      %v291 = vld.sshfl [vmem:[#allocation1 + $0x10] sm:$0xff pattern:$0x75316420]
      %v292 = vld.sshfl [vmem:[#allocation1 + $0x18] sm:$0xff pattern:$0x75316420]
      %293 = vrot.lane.b32.xlu0 %v289, 108
      %v294 = vpop.permute.xlu0 %293
      %295 = vrot.lane.b32.xlu0 %v290, 108
      %v296 = vpop.permute.xlu0 %295
      %297 = vrot.lane.b32.xlu0 %v291, 108
      %v298 = vpop.permute.xlu0 %297
      %299 = vrot.lane.b32.xlu0 %v292, 108
      %v300 = vpop.permute.xlu0 %299
      %vm301 = vcmask 883712
      %v302 = vsel %vm301, %v294, %v296
      %v303 = vsel %vm301, %v296, %v298
      %v304 = vsel %vm301, %v298, %v300
      %308 = vst [vmem:[#allocation1] ss:$2 sm:$0xff] %v180
      %s309 = scalar_lea.vmem [#allocation1], 16
      %310 = vst [vmem:[%s309] ss:$2 sm:$0xff] %v182
      %v311 = vld.sshfl [vmem:[#allocation1] sm:$0xff pattern:$0x75316420]
      %v312 = vld.sshfl [vmem:[#allocation1 + $0x8] sm:$0xff pattern:$0x75316420]
      %v313 = vld.sshfl [vmem:[#allocation1 + $0x10] sm:$0xff pattern:$0x75316420]
      %v314 = vld.sshfl [vmem:[#allocation1 + $0x18] sm:$0xff pattern:$0x75316420]
      %315 = vrot.lane.b32.xlu0 %v311, 92
      %v316 = vpop.permute.xlu0 %315
      %317 = vrot.lane.b32.xlu0 %v312, 92
      %v318 = vpop.permute.xlu0 %317
      %319 = vrot.lane.b32.xlu0 %v313, 92
      %v320 = vpop.permute.xlu0 %319
      %321 = vrot.lane.b32.xlu0 %v314, 92
      %v322 = vpop.permute.xlu0 %321
      %vm323 = vcmask 752640
      %v324 = vsel %vm323, %v316, %v318
      %v325 = vsel %vm323, %v318, %v320
      %v326 = vsel %vm323, %v320, %v322
      %s330 = scalar_lea.vmem [#allocation1], 1
      %331 = vst [vmem:[%s330] ss:$2 sm:$0xff] %v180
      %s332 = scalar_lea.vmem [#allocation1], 17
      %333 = vst [vmem:[%s332] ss:$2 sm:$0xff] %v182
      %v334 = vld.sshfl [vmem:[#allocation1] sm:$0xff pattern:$0x75316420]
      %v335 = vld.sshfl [vmem:[#allocation1 + $0x8] sm:$0xff pattern:$0x75316420]
      %v336 = vld.sshfl [vmem:[#allocation1 + $0x10] sm:$0xff pattern:$0x75316420]
      %v337 = vld.sshfl [vmem:[#allocation1 + $0x18] sm:$0xff pattern:$0x75316420]
      %338 = vrot.lane.b32.xlu0 %v334, 91
      %v339 = vpop.permute.xlu0 %338
      %340 = vrot.lane.b32.xlu0 %v335, 91
      %v341 = vpop.permute.xlu0 %340
      %342 = vrot.lane.b32.xlu0 %v336, 91
      %v343 = vpop.permute.xlu0 %342
      %344 = vrot.lane.b32.xlu0 %v337, 91
      %v345 = vpop.permute.xlu0 %344
      %vm346 = vcmask 744448
      %v347 = vsel %vm346, %v339, %v341
      %v348 = vsel %vm346, %v341, %v343
      %v349 = vsel %vm346, %v343, %v345
      %353 = vst [vmem:[#allocation1] ss:$2 sm:$0xff] %v180
      %s354 = scalar_lea.vmem [#allocation1], 16
      %355 = vst [vmem:[%s354] ss:$2 sm:$0xff] %v182
      %v356 = vld.sshfl [vmem:[#allocation1] sm:$0xff pattern:$0x75316420]
      %v357 = vld.sshfl [vmem:[#allocation1 + $0x8] sm:$0xff pattern:$0x75316420]
      %v358 = vld.sshfl [vmem:[#allocation1 + $0x10] sm:$0xff pattern:$0x75316420]
      %v359 = vld.sshfl [vmem:[#allocation1 + $0x18] sm:$0xff pattern:$0x75316420]
      %360 = vrot.lane.b32.xlu0 %v356, 90
      %v361 = vpop.permute.xlu0 %360
      %362 = vrot.lane.b32.xlu0 %v357, 90
      %v363 = vpop.permute.xlu0 %362
      %364 = vrot.lane.b32.xlu0 %v358, 90
      %v365 = vpop.permute.xlu0 %364
      %366 = vrot.lane.b32.xlu0 %v359, 90
      %v367 = vpop.permute.xlu0 %366
      %vm368 = vcmask 736256
      %v369 = vsel %vm368, %v361, %v363
      %v370 = vsel %vm368, %v363, %v365
      %v371 = vsel %vm368, %v365, %v367
      %vm375 = vcmask 1043456
      %v376 = vsel %vm375, %v188, %v212
      %v377 = vsel %vm375, %v189, %v213
      %v378 = vsel %vm375, %v190, %v214
      %v379 = vsel %vm375, %v234, %v257
      %v380 = vsel %vm375, %v235, %v258
      %v381 = vsel %vm375, %v236, %v259
      %v382 = vsel %vm375, %v279, %v302
      %v383 = vsel %vm375, %v280, %v303
      %v384 = vsel %vm375, %v281, %v304
      %v385 = vsel %vm375, %v324, %v347
      %v386 = vsel %vm375, %v325, %v348
      %v387 = vsel %vm375, %v326, %v349
      %v388 = vsel %vm375, %v369, 1.0
      %v389 = vsel %vm375, %v370, 1.0
      %v390 = vsel %vm375, %v371, 1.0
      %v391 = vld [vmem:[%s1] sm:$0xff]
      %v392 = vld [vmem:[%s1 + $0x8] sm:$0xff]
      %v393 = vld [vmem:[%s1 + $0x10] sm:$0xff]
      %v394 = vld [vmem:[%s1 + $0x18] sm:$0xff]
      %vm395 = vcmask 302080
      %v397 = vsel %vm395, %v391, 0
      %v400 = vsel %vm395, %v392, 0
      %v403 = vsel %vm395, %v393, 0
      %v406 = vsel %vm395, %v394, 0
      %vm408 = vcmask 1044480
      %v410 = vsel %vm408, %v388, 0
      %v413 = vsel %vm408, %v389, 0
      %v416 = vsel %vm408, %v390, 0
      %418 = vmatpush.msra.mxu0 0.0
      %419 = vmatpush.msra.mxu0 0.0
      %420 = vmatpush.msra.mxu0 0.0
      %421 = vmatpush.msra.mxu0 0.0
      %422 = vmatpush.msra.mxu0 0.0
      %423 = vmatpush.msra.mxu0 0.0
      %424 = vmatpush.msra.mxu0 0.0
      %425 = vmatpush.msra.mxu0 0.0
      %426 = vmatpush.msra.mxu0 0.0
      %427 = vmatpush.msra.mxu0 0.0
      %428 = vmatpush.msra.mxu0 0.0
      %429 = vmatpush.msra.mxu0 %v410
      %430 = vmatpush.msra.mxu0 %v385
      %431 = vmatpush.msra.mxu0 %v382
      %432 = vmatpush.msra.mxu0 %v379
      %433 = vmatpush.msra.mxu0 %v376
      %434 = vmatmul.f32.gmra.mxu0 %v397
      %v435 = vpop.f32.mrf.mxu0
      %v436 = vadd.f32 0.0, %v435
      %437 = vmatmul.f32.gmra.mxu0 %v400
      %v438 = vpop.f32.mrf.mxu0
      %v439 = vadd.f32 0.0, %v438
      %440 = vmatmul.f32.gmra.mxu0 %v403
      %v441 = vpop.f32.mrf.mxu0
      %v442 = vadd.f32 0.0, %v441
      %443 = vmatmul.f32.gmra.mxu0 %v406
      %v444 = vpop.f32.mrf.mxu0
      %v445 = vadd.f32 0.0, %v444
      %446 = vdwg.mxu0
      %447 = vmatpush.msra.mxu0 0.0
      %448 = vmatpush.msra.mxu0 0.0
      %449 = vmatpush.msra.mxu0 0.0
      %450 = vmatpush.msra.mxu0 0.0
      %451 = vmatpush.msra.mxu0 0.0
      %452 = vmatpush.msra.mxu0 0.0
      %453 = vmatpush.msra.mxu0 0.0
      %454 = vmatpush.msra.mxu0 0.0
      %455 = vmatpush.msra.mxu0 0.0
      %456 = vmatpush.msra.mxu0 0.0
      %457 = vmatpush.msra.mxu0 0.0
      %458 = vmatpush.msra.mxu0 %v413
      %459 = vmatpush.msra.mxu0 %v386
      %460 = vmatpush.msra.mxu0 %v383
      %461 = vmatpush.msra.mxu0 %v380
      %462 = vmatpush.msra.mxu0 %v377
      %463 = vmatmul.f32.gmra.mxu0 %v397
      %v464 = vpop.f32.mrf.mxu0
      %v465 = vadd.f32 0.0, %v464
      %466 = vmatmul.f32.gmra.mxu0 %v400
      %v467 = vpop.f32.mrf.mxu0
      %v468 = vadd.f32 0.0, %v467
      %469 = vmatmul.f32.gmra.mxu0 %v403
      %v470 = vpop.f32.mrf.mxu0
      %v471 = vadd.f32 0.0, %v470
      %472 = vmatmul.f32.gmra.mxu0 %v406
      %v473 = vpop.f32.mrf.mxu0
      %v474 = vadd.f32 0.0, %v473
      %475 = vdwg.mxu0
      %476 = vmatpush.msra.mxu0 0.0
      %477 = vmatpush.msra.mxu0 0.0
      %478 = vmatpush.msra.mxu0 0.0
      %479 = vmatpush.msra.mxu0 0.0
      %480 = vmatpush.msra.mxu0 0.0
      %481 = vmatpush.msra.mxu0 0.0
      %482 = vmatpush.msra.mxu0 0.0
      %483 = vmatpush.msra.mxu0 0.0
      %484 = vmatpush.msra.mxu0 0.0
      %485 = vmatpush.msra.mxu0 0.0
      %486 = vmatpush.msra.mxu0 0.0
      %487 = vmatpush.msra.mxu0 %v416
      %488 = vmatpush.msra.mxu0 %v387
      %489 = vmatpush.msra.mxu0 %v384
      %490 = vmatpush.msra.mxu0 %v381
      %491 = vmatpush.msra.mxu0 %v378
      %492 = vmatmul.f32.gmra.mxu0 %v397
      %v493 = vpop.f32.mrf.mxu0
      %v494 = vadd.f32 0.0, %v493
      %495 = vmatmul.f32.gmra.mxu0 %v400
      %v496 = vpop.f32.mrf.mxu0
      %v497 = vadd.f32 0.0, %v496
      %498 = vmatmul.f32.gmra.mxu0 %v403
      %v499 = vpop.f32.mrf.mxu0
      %v500 = vadd.f32 0.0, %v499
      %501 = vmatmul.f32.gmra.mxu0 %v406
      %v502 = vpop.f32.mrf.mxu0
      %v503 = vadd.f32 0.0, %v502
      %504 = vdwg.mxu0
      %505 = vst [vmem:[%s179] sm:$0xff] %v436
      %506 = vst [vmem:[%s179 + $0x8] sm:$0xff] %v465
      %507 = vst [vmem:[%s179 + $0x10] sm:$0xff] %v494
      %508 = vst [vmem:[%s179 + $0x18] sm:$0xff] %v439
      %509 = vst [vmem:[%s179 + $0x20] sm:$0xff] %v468
      %510 = vst [vmem:[%s179 + $0x28] sm:$0xff] %v497
      %511 = vst [vmem:[%s179 + $0x30] sm:$0xff] %v442
      %512 = vst [vmem:[%s179 + $0x38] sm:$0xff] %v471
      %513 = vst [vmem:[%s179 + $0x40] sm:$0xff] %v500
      %514 = vst [vmem:[%s179 + $0x48] sm:$0xff] %v445
      %515 = vst [vmem:[%s179 + $0x50] sm:$0xff] %v474
      %516 = vst [vmem:[%s179 + $0x58] sm:$0xff] %v503
      %p517 = scmp.lt.s32.totalorder %s17, 1
      %s518 = scalar_select %p517, %s17, 1
      %p519 = scmp.lt.s32.totalorder %s18, 0
      %s520 = scalar_select %p519, %s18, 0
      %s521 = smul.addr %s520, 12
      %s522 = smul.addr %s518, 12
      %s523 = sadd.s32 %s521, %s522
      %s524 = smul.addr %s523, 8
      %s525 = scalar_lea.vmem %s2, %s524
      // Predicated region
      $region29: #{decoder_block_forward.1} parent=27 // pred_check
        %p526 = pneg %p94
      $region30: #{decoder_block_forward.1} parent=27 // pred_check_branch
        %528 = sbr.rel (%p526) target = $region32
      $region31: #{decoder_block_forward.1} parent=27 // pred_region
        _
      $region32: #{decoder_block_forward.1} parent=27 // pred_fallthru
        _
    $region28: #{decoder_block_forward.1} parent=5 // pred_fallthru
      _
    %p529 = scmp.le.s32.totalorder 2, %s8
    // Predicated region
    $region33: #{decoder_block_forward.1} parent=5 // pred_check
      %p530 = pneg %p529
    $region34: #{decoder_block_forward.1} parent=5 // pred_check_branch
      %532 = sbr.rel (%p530) target = $region36
    $region35: #{decoder_block_forward.1} parent=5 // pred_region
      %s533 = ssub.s32 %s8, 2
      // Predicated region
      $region37: #{decoder_block_forward.1} parent=35 // pred_check
        %p534 = pneg %p100
      $region38: #{decoder_block_forward.1} parent=35 // pred_check_branch
        %536 = sbr.rel (%p534) target = $region40
      $region39: #{decoder_block_forward.1} parent=35 // pred_region
        %p537 = scmp.lt.s32.totalorder %s19, 1
        %s538 = scalar_select %p537, %s19, 1
        %p539 = scmp.lt.s32.totalorder %s20, 0
        %s540 = scalar_select %p539, %s20, 0
        %s541 = smul.addr %s540, 12
        %s542 = smul.addr %s538, 12
        %s543 = sadd.s32 %s541, %s542
        %s544 = smul.addr %s543, 8
        %s545 = scalar_lea.vmem %s2, %s544
      $region40: #{decoder_block_forward.1} parent=35 // pred_fallthru
        _
    $region36: #{decoder_block_forward.1} parent=5 // pred_fallthru
      _
  $region6: #{decoder_block_forward.1} parent=0 // loop_footer
    %s12 = sadd.s32 1, %s8
  $region7: #{decoder_block_forward.1} parent=0 // loop_footer_branch
    %7 = sbr.rel target = $region3
  $region8: #{decoder_block_forward.1} parent=0 // loop_exit
    _

</llo_original>
